<compile_context>
chip_gen: v6e
topology: v6e:2x2x1
jax: 0.10.0
libtpu: 0.0.40
codegen_flags: <defaults>
</compile_context>

<pallas_src>
import functools

import jax
import jax.numpy as jnp
from jax.experimental import pallas as pl
from jax.experimental.pallas import tpu as pltpu


def bounded_control_kernel(x_ref, w_ref, b_ref, o_ref, *, gamma):
    # net(x): Linear layer -> MXU matmul (native input dtype, f32 accumulation)
    # + bias add on the VPU (bf16 bias promotes to f32 automatically).
    y = jnp.dot(x_ref[...], w_ref[...], preferred_element_type=jnp.float32)
    y = y + b_ref[...]

    # gamma * y / ||y||_2(dim=1): one rsqrt (EUP slot) + one multiply (VPU),
    # with gamma folded into the per-row scale.
    sumsq = jnp.sum(y * y, axis=1, keepdims=True)
    scale = gamma * jax.lax.rsqrt(sumsq)
    o_ref[...] = (y * scale).astype(o_ref.dtype)


def _tensorcores_per_chip():
    """2 where a 'parallel' grid axis can be sharded across cores (v4/v5p megacore, v7x)."""
    try:
        kind = jax.devices()[0].device_kind.lower()
    except Exception:
        return 1
    return 2 if any(tag in kind for tag in ("v4", "v5p", "v7")) else 1


def _round_up(v, m):
    return ((v + m - 1) // m) * m


def _pick_tm(B, Din, Dout, itemsize, num_cores, tile_budget_bytes=24 * 1024 * 1024):
    """Largest batch tile that fits the VMEM tile budget, multiple of 8,
    shrunk so every TensorCore gets at least one grid step."""
    if B <= 8:
        return B
    # Per-row VMEM: double-buffered x and out tiles + f32 intermediates.
    per_row = 2 * (Din + Dout) * itemsize + Dout * 4
    tm_max = max(8, (tile_budget_bytes // per_row) // 8 * 8)
    tm = min(_round_up(B, 8), 1024, tm_max)
    if num_cores > 1:
        # Ensure >= num_cores grid steps so the "parallel" axis feeds all cores.
        tm = min(tm, max(8, _round_up(pl.cdiv(B, num_cores), 8)))
    return tm


def bounded_control(x, w, b, gamma, *, tm=None):
    """x: [B, Din], w: [Din, Dout], b: [1, Dout] -> [B, Dout] in x.dtype.

    Batch axis is tiled (tm rows per grid step, pipeline double-buffered);
    the weight matrix and bias stay VMEM-resident across all grid steps.
    """
    B, Din = x.shape
    Dout = w.shape[1]
    num_cores = _tensorcores_per_chip()
    if tm is None:
        tm = _pick_tm(B, Din, Dout, x.dtype.itemsize, num_cores)

    # Size the scoped VMEM limit from the real footprint (with headroom),
    # capped well below v7x's 64 MiB physical VMEM per TensorCore.
    est_itemsize = max(x.dtype.itemsize, 4)  # conservative: f32 intermediates
    footprint = (2 * tm * Din + 2 * tm * Dout + tm * Dout + 2 * Din * Dout) * est_itemsize
    vmem_limit = int(min(48 * 1024 * 1024, max(16 * 1024 * 1024, 2 * footprint)))

    out_dtype = x.dtype
    cost = pl.CostEstimate(
        flops=2 * B * Din * Dout + 4 * B * Dout,
        transcendentals=B,  # one rsqrt per row
        bytes_accessed=int(
            x.size * x.dtype.itemsize
            + w.size * w.dtype.itemsize
            + b.size * b.dtype.itemsize
            + B * Dout * jnp.dtype(out_dtype).itemsize
        ),
    )

    kernel = functools.partial(bounded_control_kernel, gamma=float(gamma))
    return pl.pallas_call(
        kernel,
        out_shape=jax.ShapeDtypeStruct((B, Dout), out_dtype),
        grid=(pl.cdiv(B, tm),),
        in_specs=[
            pl.BlockSpec((tm, Din), lambda i: (i, 0)),    # x: tiled on batch
            pl.BlockSpec((Din, Dout), lambda i: (0, 0)),  # w: resident (full Dout -> norm is valid)
            pl.BlockSpec((1, Dout), lambda i: (0, 0)),    # bias: resident
        ],
        out_specs=pl.BlockSpec((tm, Dout), lambda i: (i, 0)),
        compiler_params=pltpu.CompilerParams(
            dimension_semantics=("parallel",),            # shard batch tiles across TCs
            vmem_limit_bytes=vmem_limit,
        ),
        cost_estimate=cost,
    )(x, w, b)


if __name__ == "__main__":
    # Lane-dense small shapes: batch=512, hidden=128, out=128
    # (Dout a multiple of 128 -> unmasked vector stores).
    B, Din, Dout = 512, 128, 128
    gamma = 0.5

    key = jax.random.PRNGKey(0)
    kx, kw, kb = jax.random.split(key, 3)
    x = jax.random.normal(kx, (B, Din), dtype=jnp.float32)
    # Deterministic "net" (Linear layer) parameters, synthetic init.
    w = jax.random.normal(kw, (Din, Dout), dtype=jnp.float32) * (1.0 / jnp.sqrt(Din))
    b = jax.random.normal(kb, (1, Dout), dtype=jnp.float32) * 0.1

    # f32 path: exact match to the PyTorch semantics.
    out = jax.block_until_ready(bounded_control(x, w, b, gamma))
    y_ref = x @ w + b
    ref = gamma * y_ref / jnp.linalg.norm(y_ref, axis=1, keepdims=True)
    assert out.dtype == jnp.float32
    assert jnp.allclose(out, ref, atol=1e-5, rtol=1e-4)

    # bf16 path: halves HBM traffic (inputs + writeback), f32 MXU accumulation.
    xb, wb, bb = (v.astype(jnp.bfloat16) for v in (x, w, b))
    out_bf = jax.block_until_ready(bounded_control(xb, wb, bb, gamma))
    y_bf = xb.astype(jnp.float32) @ wb.astype(jnp.float32) + bb.astype(jnp.float32)
    ref_bf = gamma * y_bf / jnp.linalg.norm(y_bf, axis=1, keepdims=True)
    assert out_bf.dtype == jnp.bfloat16
    assert jnp.allclose(out_bf.astype(jnp.float32), ref_bf, atol=2e-2, rtol=2e-2)

    print("KERNEL_OK")
</pallas_src>

<mosaic_0001>
module attributes {stable_mosaic.version = 11 : i64} {
  func.func @bounded_control_kernel(%arg0: i32, %arg1: memref<512x128xf32, #tpu.memory_space<vmem>>, %arg2: memref<128x128xf32, #tpu.memory_space<vmem>>, %arg3: memref<1x128xf32, #tpu.memory_space<vmem>>, %arg4: memref<512x128xf32, #tpu.memory_space<vmem>>) attributes {dimension_semantics = [#tpu.dimension_semantics<parallel>], iteration_bounds = array<i64: 1>, scalar_prefetch = 0 : i64, scratch_operands = 0 : i64, tpu.core_type = #tpu.core_type<tc>, window_params = [{transform_indices = @transform_0, window_bounds = array<i64: 512, 128>}, {pipeline_mode = #tpu.pipeline_mode<synchronous>, transform_indices = @transform_1, window_bounds = array<i64: 128, 128>}, {pipeline_mode = #tpu.pipeline_mode<synchronous>, transform_indices = @transform_2, window_bounds = array<i64: 1, 128>}, {transform_indices = @transform_3, window_bounds = array<i64: 512, 128>}]} {
    %c0 = arith.constant 0 : index
    %c0_0 = arith.constant 0 : index
    %0 = vector.load %arg1[%c0, %c0_0] : memref<512x128xf32, #tpu.memory_space<vmem>>, vector<512x128xf32>
    %c0_1 = arith.constant 0 : index
    %c0_2 = arith.constant 0 : index
    %1 = vector.load %arg2[%c0_1, %c0_2] : memref<128x128xf32, #tpu.memory_space<vmem>>, vector<128x128xf32>
    %cst = arith.constant dense<0.000000e+00> : vector<512x128xf32>
    %2 = tpu.matmul %0, %1, %cst {dimension_numbers = #tpu.dot_dimension_numbers<[1], [0], [0], [1], [0, 0, 1, 1], [], []>} : vector<512x128xf32>, vector<128x128xf32>, vector<512x128xf32> -> vector<512x128xf32>
    %c0_3 = arith.constant 0 : index
    %c0_4 = arith.constant 0 : index
    %3 = vector.load %arg3[%c0_3, %c0_4] : memref<1x128xf32, #tpu.memory_space<vmem>>, vector<1x128xf32>
    %4 = vector.broadcast %3 : vector<1x128xf32> to vector<512x128xf32>
    %5 = arith.addf %2, %4 : vector<512x128xf32>
    %6 = arith.mulf %5, %5 : vector<512x128xf32>
    %cst_5 = arith.constant dense<0.000000e+00> : vector<512xf32>
    %7 = vector.multi_reduction <add>, %6, %cst_5 [1] : vector<512x128xf32> to vector<512xf32>
    %8 = vector.shape_cast %7 : vector<512xf32> to vector<512x1xf32>
    %9 = math.rsqrt %8 : vector<512x1xf32>
    %cst_6 = arith.constant 5.000000e-01 : f32
    %10 = vector.broadcast %cst_6 : f32 to vector<512x1xf32>
    %11 = arith.mulf %10, %9 : vector<512x1xf32>
    %12 = vector.broadcast %11 : vector<512x1xf32> to vector<512x128xf32>
    %13 = arith.mulf %5, %12 : vector<512x128xf32>
    %c0_7 = arith.constant 0 : index
    %c0_8 = arith.constant 0 : index
    %14 = vector.load %arg4[%c0_7, %c0_8] : memref<512x128xf32, #tpu.memory_space<vmem>>, vector<512x128xf32>
    tpu.vector_store %arg4[%c0_7, %c0_8], %13 {strides = array<i32>} : memref<512x128xf32, #tpu.memory_space<vmem>>, vector<512x128xf32>,
    return
  }
  func.func @transform_0(%arg0: i32) -> (i32, i32) {
    %c0_i32 = arith.constant 0 : i32
    %c0_i32_0 = arith.constant 0 : i32
    return %arg0, %c0_i32 : i32, i32
  }
  func.func @transform_1(%arg0: i32) -> (i32, i32) {
    %c0_i32 = arith.constant 0 : i32
    %c0_i32_0 = arith.constant 0 : i32
    %c0_i32_1 = arith.constant 0 : i32
    return %c0_i32, %c0_i32_0 : i32, i32
  }
  func.func @transform_2(%arg0: i32) -> (i32, i32) {
    %c0_i32 = arith.constant 0 : i32
    %c0_i32_0 = arith.constant 0 : i32
    %c0_i32_1 = arith.constant 0 : i32
    return %c0_i32, %c0_i32_0 : i32, i32
  }
  func.func @transform_3(%arg0: i32) -> (i32, i32) {
    %c0_i32 = arith.constant 0 : i32
    %c0_i32_0 = arith.constant 0 : i32
    return %arg0, %c0_i32 : i32, i32
  }
}

</mosaic_0001>

<llo_original>
// kernel: tpu_custom_call.1
$region0: #{tpu_custom_call.1}
  #allocation0 [shape = 'u32[]', space=smem, size = 0x4, offset = 0x4, fixed_abs, tag = 'smem constant byte address 0x4 - core index']
  #allocation1 [shape = 'u32[144,128]{1,0:T(1,128)}', space=vmem, size = 0x12000, scoped, tag = 'internal scratch']
  %s0 = inlined_call_operand.hbm [shape: f32[512,128], index: 0, kind: input, shape index: {}]
  %s1 = inlined_call_operand.hbm [shape: f32[128,128], index: 1, kind: input, shape index: {}]
  %s2 = inlined_call_operand.vmem [shape: f32[1,128], index: 2, kind: input, shape index: {}]
  %s3 = inlined_call_operand.hbm [shape: f32[512,128], index: 3, kind: output, shape index: {}]
  %s4 = sld [smem:[#allocation0]]
  $region30: #{tpu_custom_call.1} parent=0
    _
  %s6 = ssub.s32 1, %s4
  %s7 = scalar_select 0, %s6, %s4
  $region1: #{tpu_custom_call.1} parent=0
    #allocation2 [shape = 'u8[262144]{0}', space=vmem, size = 0x40000, scoped, tag = 'input window, operand 0, single buffered']
    #allocation3 [shape = 's32[1]{0}', space=sflag, size = 0x4, scoped, tag = 'scoped memory for tpu_custom_call.1']
    #allocation4 [shape = 's32[1]{0}', space=sflag, size = 0x4, scoped, tag = 'scoped memory for tpu_custom_call.1']
    #allocation5 [shape = 'u8[65536]{0}', space=vmem, size = 0x10000, scoped, tag = 'input window, operand 1, single buffered']
    #allocation6 [shape = 's32[1]{0}', space=sflag, size = 0x4, scoped, tag = 'scoped memory for tpu_custom_call.1']
    #allocation7 [shape = 'u8[262144]{0}', space=vmem, size = 0x40000, scoped, tag = 'output window, operand 0, single buffered']
    %8 = vsyncpa [#allocation3], 0
    %9 = vsyncpa [#allocation6], 0
    %10 = vsyncpa [#allocation4], 0
    // Predicated region
    $region2: #{tpu_custom_call.1} parent=1 // pred_check
      _
    $region3: #{tpu_custom_call.1} parent=1 // pred_check_branch
      %12 = sbr.rel (0) target = $region5
    $region4: #{tpu_custom_call.1} parent=1 // pred_region
      %s14 = ssub.s32 8192, 8192
      %15 = vsyncadd [#allocation3], %s14
      %s16 = sshll.u32 [#allocation2], 4
      %s17 = int_to_ptr.vmem [resolvable:$true] %s16
      %22 = dma.hbm_to_vmem [thread:$0]  %s0, 8192, %s17, [#allocation3], 128, 128, 8
    $region5: #{tpu_custom_call.1} parent=1 // pred_fallthru
      _
    // Predicated region
    $region6: #{tpu_custom_call.1} parent=1 // pred_check
      _
    $region7: #{tpu_custom_call.1} parent=1 // pred_check_branch
      %24 = sbr.rel (0) target = $region9
    $region8: #{tpu_custom_call.1} parent=1 // pred_region
      %s26 = ssub.s32 2048, 2048
      %27 = vsyncadd [#allocation6], %s26
      %s28 = sshll.u32 [#allocation5], 4
      %s29 = int_to_ptr.vmem [resolvable:$true] %s28
      %34 = dma.hbm_to_vmem [thread:$0]  %s1, 2048, %s29, [#allocation6], 128, 128, 8
    $region9: #{tpu_custom_call.1} parent=1 // pred_fallthru
      _
    // Predicated region
    $region10: #{tpu_custom_call.1} parent=1 // pred_check
      _
    $region11: #{tpu_custom_call.1} parent=1 // pred_check_branch
      %36 = sbr.rel (0) target = $region13
    $region12: #{tpu_custom_call.1} parent=1 // pred_region
      _
    $region13: #{tpu_custom_call.1} parent=1 // pred_fallthru
      _
    // Predicated region
    $region14: #{tpu_custom_call.1} parent=1 // pred_check
      _
    $region15: #{tpu_custom_call.1} parent=1 // pred_check_branch
      %38 = sbr.rel (0) target = $region17
    $region16: #{tpu_custom_call.1} parent=1 // pred_region
      %39 = dma.done [#allocation3], 8192
    $region17: #{tpu_custom_call.1} parent=1 // pred_fallthru
      _
    // Predicated region
    $region18: #{tpu_custom_call.1} parent=1 // pred_check
      _
    $region19: #{tpu_custom_call.1} parent=1 // pred_check_branch
      %41 = sbr.rel (0) target = $region21
    $region20: #{tpu_custom_call.1} parent=1 // pred_region
      %42 = dma.done [#allocation6], 2048
    $region21: #{tpu_custom_call.1} parent=1 // pred_fallthru
      _
    %v43 = vld [vmem:[#allocation2] sm:$0xff]
    %v44 = vld [vmem:[#allocation2 + $0x8] sm:$0xff]
    %v45 = vld [vmem:[#allocation2 + $0x10] sm:$0xff]
    %v46 = vld [vmem:[#allocation2 + $0x18] sm:$0xff]
    %v47 = vld [vmem:[#allocation2 + $0x20] sm:$0xff]
    %v48 = vld [vmem:[#allocation2 + $0x28] sm:$0xff]
    %v49 = vld [vmem:[#allocation2 + $0x30] sm:$0xff]
    %v50 = vld [vmem:[#allocation2 + $0x38] sm:$0xff]
    %v51 = vld [vmem:[#allocation2 + $0x40] sm:$0xff]
    %v52 = vld [vmem:[#allocation2 + $0x48] sm:$0xff]
    %v53 = vld [vmem:[#allocation2 + $0x50] sm:$0xff]
    %v54 = vld [vmem:[#allocation2 + $0x58] sm:$0xff]
    %v55 = vld [vmem:[#allocation2 + $0x60] sm:$0xff]
    %v56 = vld [vmem:[#allocation2 + $0x68] sm:$0xff]
    %v57 = vld [vmem:[#allocation2 + $0x70] sm:$0xff]
    %v58 = vld [vmem:[#allocation2 + $0x78] sm:$0xff]
    %v59 = vld [vmem:[#allocation2 + $0x80] sm:$0xff]
    %v60 = vld [vmem:[#allocation2 + $0x88] sm:$0xff]
    %v61 = vld [vmem:[#allocation2 + $0x90] sm:$0xff]
    %v62 = vld [vmem:[#allocation2 + $0x98] sm:$0xff]
    %v63 = vld [vmem:[#allocation2 + $0xa0] sm:$0xff]
    %v64 = vld [vmem:[#allocation2 + $0xa8] sm:$0xff]
    %v65 = vld [vmem:[#allocation2 + $0xb0] sm:$0xff]
    %v66 = vld [vmem:[#allocation2 + $0xb8] sm:$0xff]
    %v67 = vld [vmem:[#allocation2 + $0xc0] sm:$0xff]
    %v68 = vld [vmem:[#allocation2 + $0xc8] sm:$0xff]
    %v69 = vld [vmem:[#allocation2 + $0xd0] sm:$0xff]
    %v70 = vld [vmem:[#allocation2 + $0xd8] sm:$0xff]
    %v71 = vld [vmem:[#allocation2 + $0xe0] sm:$0xff]
    %v72 = vld [vmem:[#allocation2 + $0xe8] sm:$0xff]
    %v73 = vld [vmem:[#allocation2 + $0xf0] sm:$0xff]
    %v74 = vld [vmem:[#allocation2 + $0xf8] sm:$0xff]
    %v75 = vld [vmem:[#allocation2 + $0x100] sm:$0xff]
    %v76 = vld [vmem:[#allocation2 + $0x108] sm:$0xff]
    %v77 = vld [vmem:[#allocation2 + $0x110] sm:$0xff]
    %v78 = vld [vmem:[#allocation2 + $0x118] sm:$0xff]
    %v79 = vld [vmem:[#allocation2 + $0x120] sm:$0xff]
    %v80 = vld [vmem:[#allocation2 + $0x128] sm:$0xff]
    %v81 = vld [vmem:[#allocation2 + $0x130] sm:$0xff]
    %v82 = vld [vmem:[#allocation2 + $0x138] sm:$0xff]
    %v83 = vld [vmem:[#allocation2 + $0x140] sm:$0xff]
    %v84 = vld [vmem:[#allocation2 + $0x148] sm:$0xff]
    %v85 = vld [vmem:[#allocation2 + $0x150] sm:$0xff]
    %v86 = vld [vmem:[#allocation2 + $0x158] sm:$0xff]
    %v87 = vld [vmem:[#allocation2 + $0x160] sm:$0xff]
    %v88 = vld [vmem:[#allocation2 + $0x168] sm:$0xff]
    %v89 = vld [vmem:[#allocation2 + $0x170] sm:$0xff]
    %v90 = vld [vmem:[#allocation2 + $0x178] sm:$0xff]
    %v91 = vld [vmem:[#allocation2 + $0x180] sm:$0xff]
    %v92 = vld [vmem:[#allocation2 + $0x188] sm:$0xff]
    %v93 = vld [vmem:[#allocation2 + $0x190] sm:$0xff]
    %v94 = vld [vmem:[#allocation2 + $0x198] sm:$0xff]
    %v95 = vld [vmem:[#allocation2 + $0x1a0] sm:$0xff]
    %v96 = vld [vmem:[#allocation2 + $0x1a8] sm:$0xff]
    %v97 = vld [vmem:[#allocation2 + $0x1b0] sm:$0xff]
    %v98 = vld [vmem:[#allocation2 + $0x1b8] sm:$0xff]
    %v99 = vld [vmem:[#allocation2 + $0x1c0] sm:$0xff]
    %v100 = vld [vmem:[#allocation2 + $0x1c8] sm:$0xff]
    %v101 = vld [vmem:[#allocation2 + $0x1d0] sm:$0xff]
    %v102 = vld [vmem:[#allocation2 + $0x1d8] sm:$0xff]
    %v103 = vld [vmem:[#allocation2 + $0x1e0] sm:$0xff]
    %v104 = vld [vmem:[#allocation2 + $0x1e8] sm:$0xff]
    %v105 = vld [vmem:[#allocation2 + $0x1f0] sm:$0xff]
    %v106 = vld [vmem:[#allocation2 + $0x1f8] sm:$0xff]
    %v107 = vld [vmem:[#allocation5] sm:$0xff]
    %v108 = vld [vmem:[#allocation5 + $0x8] sm:$0xff]
    %v109 = vld [vmem:[#allocation5 + $0x10] sm:$0xff]
    %v110 = vld [vmem:[#allocation5 + $0x18] sm:$0xff]
    %v111 = vld [vmem:[#allocation5 + $0x20] sm:$0xff]
    %v112 = vld [vmem:[#allocation5 + $0x28] sm:$0xff]
    %v113 = vld [vmem:[#allocation5 + $0x30] sm:$0xff]
    %v114 = vld [vmem:[#allocation5 + $0x38] sm:$0xff]
    %v115 = vld [vmem:[#allocation5 + $0x40] sm:$0xff]
    %v116 = vld [vmem:[#allocation5 + $0x48] sm:$0xff]
    %v117 = vld [vmem:[#allocation5 + $0x50] sm:$0xff]
    %v118 = vld [vmem:[#allocation5 + $0x58] sm:$0xff]
    %v119 = vld [vmem:[#allocation5 + $0x60] sm:$0xff]
    %v120 = vld [vmem:[#allocation5 + $0x68] sm:$0xff]
    %v121 = vld [vmem:[#allocation5 + $0x70] sm:$0xff]
    %v122 = vld [vmem:[#allocation5 + $0x78] sm:$0xff]
    %v123 = vld [vmem:[%s2] sm:$0x1]
    %v125 = vlaneseq
    %v126 = vshrl.u32 %v125, 7
    %v127 = vsub.s32 0, %v126
    %v128 = vrot.slane %v123, %v127
    %130 = vmatprep.subr.mxu0 0.0
    %131 = vmatpush1.msra.mxu0 %v122
    %132 = vmatprep.subr.mxu0 0.0
    %133 = vmatpush1.msra.mxu0 %v121
    %134 = vmatprep.subr.mxu0 0.0
    %135 = vmatpush1.msra.mxu0 %v120
    %136 = vmatprep.subr.mxu0 0.0
    %137 = vmatpush1.msra.mxu0 %v119
    %138 = vmatprep.subr.mxu0 0.0
    %139 = vmatpush1.msra.mxu0 %v118
    %140 = vmatprep.subr.mxu0 0.0
    %141 = vmatpush1.msra.mxu0 %v117
    %142 = vmatprep.subr.mxu0 0.0
    %143 = vmatpush1.msra.mxu0 %v116
    %144 = vmatprep.subr.mxu0 0.0
    %145 = vmatpush1.msra.mxu0 %v115
    %146 = vmatprep.subr.mxu0 0.0
    %147 = vmatpush1.msra.mxu0 %v114
    %148 = vmatprep.subr.mxu0 0.0
    %149 = vmatpush1.msra.mxu0 %v113
    %150 = vmatprep.subr.mxu0 0.0
    %151 = vmatpush1.msra.mxu0 %v112
    %152 = vmatprep.subr.mxu0 0.0
    %153 = vmatpush1.msra.mxu0 %v111
    %154 = vmatprep.subr.mxu0 0.0
    %155 = vmatpush1.msra.mxu0 %v110
    %156 = vmatprep.subr.mxu0 0.0
    %157 = vmatpush1.msra.mxu0 %v109
    %158 = vmatprep.subr.mxu0 0.0
    %159 = vmatpush1.msra.mxu0 %v108
    %160 = vmatprep.subr.mxu0 0.0
    %161 = vmatpush1.msra.mxu0 %v107
    %162 = vmatprep.subr.mxu0 0.0
    %163 = vmatpush2.msra.mxu0 0.0
    %164 = vmatprep.subr.mxu0 0.0
    %165 = vmatpush2.msra.mxu0 0.0
    %166 = vmatprep.subr.mxu0 0.0
    %167 = vmatpush2.msra.mxu0 0.0
    %168 = vmatprep.subr.mxu0 0.0
    %169 = vmatpush2.msra.mxu0 0.0
    %170 = vmatprep.subr.mxu0 0.0
    %171 = vmatpush2.msra.mxu0 0.0
    %172 = vmatprep.subr.mxu0 0.0
    %173 = vmatpush2.msra.mxu0 0.0
    %174 = vmatprep.subr.mxu0 0.0
    %175 = vmatpush2.msra.mxu0 0.0
    %176 = vmatprep.subr.mxu0 0.0
    %177 = vmatpush2.msra.mxu0 0.0
    %178 = vmatprep.subr.mxu0 0.0
    %179 = vmatpush2.msra.mxu0 0.0
    %180 = vmatprep.subr.mxu0 0.0
    %181 = vmatpush2.msra.mxu0 0.0
    %182 = vmatprep.subr.mxu0 0.0
    %183 = vmatpush2.msra.mxu0 0.0
    %184 = vmatprep.subr.mxu0 0.0
    %185 = vmatpush2.msra.mxu0 0.0
    %186 = vmatprep.subr.mxu0 0.0
    %187 = vmatpush2.msra.mxu0 0.0
    %188 = vmatprep.subr.mxu0 0.0
    %189 = vmatpush2.msra.mxu0 0.0
    %190 = vmatprep.subr.mxu0 0.0
    %191 = vmatpush2.msra.mxu0 0.0
    %192 = vmatprep.subr.mxu0 0.0
    %193 = vmatpush2.msra.mxu0 0.0
    %194 = vmatprep.mubr.f32.mxu0 0.0
    %195 = vmatmul.mubr.f32.gmra.mxu0 %v43
    %v196 = vpop.f32.mrf.mxu0
    %v197 = vadd.f32 %v128, %v196
    %v198 = vpop.f32.mrf.mxu0
    %199 = vmatprep.mubr.f32.mxu0 0.0
    %200 = vmatmul.mubr.f32.gmra.mxu0 %v44
    %v201 = vpop.f32.mrf.mxu0
    %v202 = vadd.f32 %v128, %v201
    %v203 = vpop.f32.mrf.mxu0
    %204 = vmatprep.mubr.f32.mxu0 0.0
    %205 = vmatmul.mubr.f32.gmra.mxu0 %v45
    %v206 = vpop.f32.mrf.mxu0
    %v207 = vadd.f32 %v128, %v206
    %v208 = vpop.f32.mrf.mxu0
    %209 = vmatprep.mubr.f32.mxu0 0.0
    %210 = vmatmul.mubr.f32.gmra.mxu0 %v46
    %v211 = vpop.f32.mrf.mxu0
    %v212 = vadd.f32 %v128, %v211
    %v213 = vpop.f32.mrf.mxu0
    %214 = vmatprep.mubr.f32.mxu0 0.0
    %215 = vmatmul.mubr.f32.gmra.mxu0 %v47
    %v216 = vpop.f32.mrf.mxu0
    %v217 = vadd.f32 %v128, %v216
    %v218 = vpop.f32.mrf.mxu0
    %219 = vmatprep.mubr.f32.mxu0 0.0
    %220 = vmatmul.mubr.f32.gmra.mxu0 %v48
    %v221 = vpop.f32.mrf.mxu0
    %v222 = vadd.f32 %v128, %v221
    %v223 = vpop.f32.mrf.mxu0
    %224 = vmatprep.mubr.f32.mxu0 0.0
    %225 = vmatmul.mubr.f32.gmra.mxu0 %v49
    %v226 = vpop.f32.mrf.mxu0
    %v227 = vadd.f32 %v128, %v226
    %v228 = vpop.f32.mrf.mxu0
    %229 = vmatprep.mubr.f32.mxu0 0.0
    %230 = vmatmul.mubr.f32.gmra.mxu0 %v50
    %v231 = vpop.f32.mrf.mxu0
    %v232 = vadd.f32 %v128, %v231
    %v233 = vpop.f32.mrf.mxu0
    %234 = vmatprep.mubr.f32.mxu0 0.0
    %235 = vmatmul.mubr.f32.gmra.mxu0 %v51
    %v236 = vpop.f32.mrf.mxu0
    %v237 = vadd.f32 %v128, %v236
    %v238 = vpop.f32.mrf.mxu0
    %239 = vmatprep.mubr.f32.mxu0 0.0
    %240 = vmatmul.mubr.f32.gmra.mxu0 %v52
    %v241 = vpop.f32.mrf.mxu0
    %v242 = vadd.f32 %v128, %v241
    %v243 = vpop.f32.mrf.mxu0
    %244 = vmatprep.mubr.f32.mxu0 0.0
    %245 = vmatmul.mubr.f32.gmra.mxu0 %v53
    %v246 = vpop.f32.mrf.mxu0
    %v247 = vadd.f32 %v128, %v246
    %v248 = vpop.f32.mrf.mxu0
    %249 = vmatprep.mubr.f32.mxu0 0.0
    %250 = vmatmul.mubr.f32.gmra.mxu0 %v54
    %v251 = vpop.f32.mrf.mxu0
    %v252 = vadd.f32 %v128, %v251
    %v253 = vpop.f32.mrf.mxu0
    %254 = vmatprep.mubr.f32.mxu0 0.0
    %255 = vmatmul.mubr.f32.gmra.mxu0 %v55
    %v256 = vpop.f32.mrf.mxu0
    %v257 = vadd.f32 %v128, %v256
    %v258 = vpop.f32.mrf.mxu0
    %259 = vmatprep.mubr.f32.mxu0 0.0
    %260 = vmatmul.mubr.f32.gmra.mxu0 %v56
    %v261 = vpop.f32.mrf.mxu0
    %v262 = vadd.f32 %v128, %v261
    %v263 = vpop.f32.mrf.mxu0
    %264 = vmatprep.mubr.f32.mxu0 0.0
    %265 = vmatmul.mubr.f32.gmra.mxu0 %v57
    %v266 = vpop.f32.mrf.mxu0
    %v267 = vadd.f32 %v128, %v266
    %v268 = vpop.f32.mrf.mxu0
    %269 = vmatprep.mubr.f32.mxu0 0.0
    %270 = vmatmul.mubr.f32.gmra.mxu0 %v58
    %v271 = vpop.f32.mrf.mxu0
    %v272 = vadd.f32 %v128, %v271
    %v273 = vpop.f32.mrf.mxu0
    %274 = vmatprep.mubr.f32.mxu0 0.0
    %275 = vmatmul.mubr.f32.gmra.mxu0 %v59
    %v276 = vpop.f32.mrf.mxu0
    %v277 = vadd.f32 %v128, %v276
    %v278 = vpop.f32.mrf.mxu0
    %279 = vmatprep.mubr.f32.mxu0 0.0
    %280 = vmatmul.mubr.f32.gmra.mxu0 %v60
    %v281 = vpop.f32.mrf.mxu0
    %v282 = vadd.f32 %v128, %v281
    %v283 = vpop.f32.mrf.mxu0
    %284 = vmatprep.mubr.f32.mxu0 0.0
    %285 = vmatmul.mubr.f32.gmra.mxu0 %v61
    %v286 = vpop.f32.mrf.mxu0
    %v287 = vadd.f32 %v128, %v286
    %v288 = vpop.f32.mrf.mxu0
    %289 = vmatprep.mubr.f32.mxu0 0.0
    %290 = vmatmul.mubr.f32.gmra.mxu0 %v62
    %v291 = vpop.f32.mrf.mxu0
    %v292 = vadd.f32 %v128, %v291
    %v293 = vpop.f32.mrf.mxu0
    %294 = vmatprep.mubr.f32.mxu0 0.0
    %295 = vmatmul.mubr.f32.gmra.mxu0 %v63
    %v296 = vpop.f32.mrf.mxu0
    %v297 = vadd.f32 %v128, %v296
    %v298 = vpop.f32.mrf.mxu0
    %299 = vmatprep.mubr.f32.mxu0 0.0
    %300 = vmatmul.mubr.f32.gmra.mxu0 %v64
    %v301 = vpop.f32.mrf.mxu0
    %v302 = vadd.f32 %v128, %v301
    %v303 = vpop.f32.mrf.mxu0
    %304 = vmatprep.mubr.f32.mxu0 0.0
    %305 = vmatmul.mubr.f32.gmra.mxu0 %v65
    %v306 = vpop.f32.mrf.mxu0
    %v307 = vadd.f32 %v128, %v306
    %v308 = vpop.f32.mrf.mxu0
    %309 = vmatprep.mubr.f32.mxu0 0.0
    %310 = vmatmul.mubr.f32.gmra.mxu0 %v66
    %v311 = vpop.f32.mrf.mxu0
    %v312 = vadd.f32 %v128, %v311
    %v313 = vpop.f32.mrf.mxu0
    %314 = vmatprep.mubr.f32.mxu0 0.0
    %315 = vmatmul.mubr.f32.gmra.mxu0 %v67
    %v316 = vpop.f32.mrf.mxu0
    %v317 = vadd.f32 %v128, %v316
    %v318 = vpop.f32.mrf.mxu0
    %319 = vmatprep.mubr.f32.mxu0 0.0
    %320 = vmatmul.mubr.f32.gmra.mxu0 %v68
    %v321 = vpop.f32.mrf.mxu0
    %v322 = vadd.f32 %v128, %v321
    %v323 = vpop.f32.mrf.mxu0
    %324 = vmatprep.mubr.f32.mxu0 0.0
    %325 = vmatmul.mubr.f32.gmra.mxu0 %v69
    %v326 = vpop.f32.mrf.mxu0
    %v327 = vadd.f32 %v128, %v326
    %v328 = vpop.f32.mrf.mxu0
    %329 = vmatprep.mubr.f32.mxu0 0.0
    %330 = vmatmul.mubr.f32.gmra.mxu0 %v70
    %v331 = vpop.f32.mrf.mxu0
    %v332 = vadd.f32 %v128, %v331
    %v333 = vpop.f32.mrf.mxu0
    %334 = vmatprep.mubr.f32.mxu0 0.0
    %335 = vmatmul.mubr.f32.gmra.mxu0 %v71
    %v336 = vpop.f32.mrf.mxu0
    %v337 = vadd.f32 %v128, %v336
    %v338 = vpop.f32.mrf.mxu0
    %339 = vmatprep.mubr.f32.mxu0 0.0
    %340 = vmatmul.mubr.f32.gmra.mxu0 %v72
    %v341 = vpop.f32.mrf.mxu0
    %v342 = vadd.f32 %v128, %v341
    %v343 = vpop.f32.mrf.mxu0
    %344 = vmatprep.mubr.f32.mxu0 0.0
    %345 = vmatmul.mubr.f32.gmra.mxu0 %v73
    %v346 = vpop.f32.mrf.mxu0
    %v347 = vadd.f32 %v128, %v346
    %v348 = vpop.f32.mrf.mxu0
    %349 = vmatprep.mubr.f32.mxu0 0.0
    %350 = vmatmul.mubr.f32.gmra.mxu0 %v74
    %v351 = vpop.f32.mrf.mxu0
    %v352 = vadd.f32 %v128, %v351
    %v353 = vpop.f32.mrf.mxu0
    %354 = vmatprep.mubr.f32.mxu0 0.0
    %355 = vmatmul.mubr.f32.gmra.mxu0 %v75
    %v356 = vpop.f32.mrf.mxu0
    %v357 = vadd.f32 %v128, %v356
    %v358 = vpop.f32.mrf.mxu0
    %359 = vmatprep.mubr.f32.mxu0 0.0
    %360 = vmatmul.mubr.f32.gmra.mxu0 %v76
    %v361 = vpop.f32.mrf.mxu0
    %v362 = vadd.f32 %v128, %v361
    %v363 = vpop.f32.mrf.mxu0
    %364 = vmatprep.mubr.f32.mxu0 0.0
    %365 = vmatmul.mubr.f32.gmra.mxu0 %v77
    %v366 = vpop.f32.mrf.mxu0
    %v367 = vadd.f32 %v128, %v366
    %v368 = vpop.f32.mrf.mxu0
    %369 = vmatprep.mubr.f32.mxu0 0.0
    %370 = vmatmul.mubr.f32.gmra.mxu0 %v78
    %v371 = vpop.f32.mrf.mxu0
    %v372 = vadd.f32 %v128, %v371
    %v373 = vpop.f32.mrf.mxu0
    %374 = vmatprep.mubr.f32.mxu0 0.0
    %375 = vmatmul.mubr.f32.gmra.mxu0 %v79
    %v376 = vpop.f32.mrf.mxu0
    %v377 = vadd.f32 %v128, %v376
    %v378 = vpop.f32.mrf.mxu0
    %379 = vmatprep.mubr.f32.mxu0 0.0
    %380 = vmatmul.mubr.f32.gmra.mxu0 %v80
    %v381 = vpop.f32.mrf.mxu0
    %v382 = vadd.f32 %v128, %v381
    %v383 = vpop.f32.mrf.mxu0
    %384 = vmatprep.mubr.f32.mxu0 0.0
    %385 = vmatmul.mubr.f32.gmra.mxu0 %v81
    %v386 = vpop.f32.mrf.mxu0
    %v387 = vadd.f32 %v128, %v386
    %v388 = vpop.f32.mrf.mxu0
    %389 = vmatprep.mubr.f32.mxu0 0.0
    %390 = vmatmul.mubr.f32.gmra.mxu0 %v82
    %v391 = vpop.f32.mrf.mxu0
    %v392 = vadd.f32 %v128, %v391
    %v393 = vpop.f32.mrf.mxu0
    %394 = vmatprep.mubr.f32.mxu0 0.0
    %395 = vmatmul.mubr.f32.gmra.mxu0 %v83
    %v396 = vpop.f32.mrf.mxu0
    %v397 = vadd.f32 %v128, %v396
    %v398 = vpop.f32.mrf.mxu0
    %399 = vmatprep.mubr.f32.mxu0 0.0
    %400 = vmatmul.mubr.f32.gmra.mxu0 %v84
    %v401 = vpop.f32.mrf.mxu0
    %v402 = vadd.f32 %v128, %v401
    %v403 = vpop.f32.mrf.mxu0
    %404 = vmatprep.mubr.f32.mxu0 0.0
    %405 = vmatmul.mubr.f32.gmra.mxu0 %v85
    %v406 = vpop.f32.mrf.mxu0
    %v407 = vadd.f32 %v128, %v406
    %v408 = vpop.f32.mrf.mxu0
    %409 = vmatprep.mubr.f32.mxu0 0.0
    %410 = vmatmul.mubr.f32.gmra.mxu0 %v86
    %v411 = vpop.f32.mrf.mxu0
    %v412 = vadd.f32 %v128, %v411
    %v413 = vpop.f32.mrf.mxu0
    %414 = vmatprep.mubr.f32.mxu0 0.0
    %415 = vmatmul.mubr.f32.gmra.mxu0 %v87
    %v416 = vpop.f32.mrf.mxu0
    %v417 = vadd.f32 %v128, %v416
    %v418 = vpop.f32.mrf.mxu0
    %419 = vmatprep.mubr.f32.mxu0 0.0
    %420 = vmatmul.mubr.f32.gmra.mxu0 %v88
    %v421 = vpop.f32.mrf.mxu0
    %v422 = vadd.f32 %v128, %v421
    %v423 = vpop.f32.mrf.mxu0
    %424 = vmatprep.mubr.f32.mxu0 0.0
    %425 = vmatmul.mubr.f32.gmra.mxu0 %v89
    %v426 = vpop.f32.mrf.mxu0
    %v427 = vadd.f32 %v128, %v426
    %v428 = vpop.f32.mrf.mxu0
    %429 = vmatprep.mubr.f32.mxu0 0.0
    %430 = vmatmul.mubr.f32.gmra.mxu0 %v90
    %v431 = vpop.f32.mrf.mxu0
    %v432 = vadd.f32 %v128, %v431
    %v433 = vpop.f32.mrf.mxu0
    %434 = vmatprep.mubr.f32.mxu0 0.0
    %435 = vmatmul.mubr.f32.gmra.mxu0 %v91
    %v436 = vpop.f32.mrf.mxu0
    %v437 = vadd.f32 %v128, %v436
    %v438 = vpop.f32.mrf.mxu0
    %439 = vmatprep.mubr.f32.mxu0 0.0
    %440 = vmatmul.mubr.f32.gmra.mxu0 %v92
    %v441 = vpop.f32.mrf.mxu0
    %v442 = vadd.f32 %v128, %v441
    %v443 = vpop.f32.mrf.mxu0
    %444 = vmatprep.mubr.f32.mxu0 0.0
    %445 = vmatmul.mubr.f32.gmra.mxu0 %v93
    %v446 = vpop.f32.mrf.mxu0
    %v447 = vadd.f32 %v128, %v446
    %v448 = vpop.f32.mrf.mxu0
    %449 = vmatprep.mubr.f32.mxu0 0.0
    %450 = vmatmul.mubr.f32.gmra.mxu0 %v94
    %v451 = vpop.f32.mrf.mxu0
    %v452 = vadd.f32 %v128, %v451
    %v453 = vpop.f32.mrf.mxu0
    %454 = vmatprep.mubr.f32.mxu0 0.0
    %455 = vmatmul.mubr.f32.gmra.mxu0 %v95
    %v456 = vpop.f32.mrf.mxu0
    %v457 = vadd.f32 %v128, %v456
    %v458 = vpop.f32.mrf.mxu0
    %459 = vmatprep.mubr.f32.mxu0 0.0
    %460 = vmatmul.mubr.f32.gmra.mxu0 %v96
    %v461 = vpop.f32.mrf.mxu0
    %v462 = vadd.f32 %v128, %v461
    %v463 = vpop.f32.mrf.mxu0
    %464 = vmatprep.mubr.f32.mxu0 0.0
    %465 = vmatmul.mubr.f32.gmra.mxu0 %v97
    %v466 = vpop.f32.mrf.mxu0
    %v467 = vadd.f32 %v128, %v466
    %v468 = vpop.f32.mrf.mxu0
    %469 = vmatprep.mubr.f32.mxu0 0.0
    %470 = vmatmul.mubr.f32.gmra.mxu0 %v98
    %v471 = vpop.f32.mrf.mxu0
    %v472 = vadd.f32 %v128, %v471
    %v473 = vpop.f32.mrf.mxu0
    %474 = vmatprep.mubr.f32.mxu0 0.0
    %475 = vmatmul.mubr.f32.gmra.mxu0 %v99
    %v476 = vpop.f32.mrf.mxu0
    %v477 = vadd.f32 %v128, %v476
    %v478 = vpop.f32.mrf.mxu0
    %479 = vmatprep.mubr.f32.mxu0 0.0
    %480 = vmatmul.mubr.f32.gmra.mxu0 %v100
    %v481 = vpop.f32.mrf.mxu0
    %v482 = vadd.f32 %v128, %v481
    %v483 = vpop.f32.mrf.mxu0
    %484 = vmatprep.mubr.f32.mxu0 0.0
    %485 = vmatmul.mubr.f32.gmra.mxu0 %v101
    %v486 = vpop.f32.mrf.mxu0
    %v487 = vadd.f32 %v128, %v486
    %v488 = vpop.f32.mrf.mxu0
    %489 = vmatprep.mubr.f32.mxu0 0.0
    %490 = vmatmul.mubr.f32.gmra.mxu0 %v102
    %v491 = vpop.f32.mrf.mxu0
    %v492 = vadd.f32 %v128, %v491
    %v493 = vpop.f32.mrf.mxu0
    %494 = vmatprep.mubr.f32.mxu0 0.0
    %495 = vmatmul.mubr.f32.gmra.mxu0 %v103
    %v496 = vpop.f32.mrf.mxu0
    %v497 = vadd.f32 %v128, %v496
    %v498 = vpop.f32.mrf.mxu0
    %499 = vmatprep.mubr.f32.mxu0 0.0
    %500 = vmatmul.mubr.f32.gmra.mxu0 %v104
    %v501 = vpop.f32.mrf.mxu0
    %v502 = vadd.f32 %v128, %v501
    %v503 = vpop.f32.mrf.mxu0
    %504 = vmatprep.mubr.f32.mxu0 0.0
    %505 = vmatmul.mubr.f32.gmra.mxu0 %v105
    %v506 = vpop.f32.mrf.mxu0
    %v507 = vadd.f32 %v128, %v506
    %v508 = vpop.f32.mrf.mxu0
    %509 = vmatprep.mubr.f32.mxu0 0.0
    %510 = vmatmul.mubr.f32.gmra.mxu0 %v106
    %v511 = vpop.f32.mrf.mxu0
    %v512 = vadd.f32 %v128, %v511
    %v513 = vpop.f32.mrf.mxu0
    %514 = vdwg.mxu0
    %v515 = vmul.f32 %v197, %v197
    %v516 = vmul.f32 %v202, %v202
    %v517 = vmul.f32 %v207, %v207
    %v518 = vmul.f32 %v212, %v212
    %v519 = vmul.f32 %v217, %v217
    %v520 = vmul.f32 %v222, %v222
    %v521 = vmul.f32 %v227, %v227
    %v522 = vmul.f32 %v232, %v232
    %v523 = vmul.f32 %v237, %v237
    %v524 = vmul.f32 %v242, %v242
    %v525 = vmul.f32 %v247, %v247
    %v526 = vmul.f32 %v252, %v252
    %v527 = vmul.f32 %v257, %v257
    %v528 = vmul.f32 %v262, %v262
    %v529 = vmul.f32 %v267, %v267
    %v530 = vmul.f32 %v272, %v272
    %v531 = vmul.f32 %v277, %v277
    %v532 = vmul.f32 %v282, %v282
    %v533 = vmul.f32 %v287, %v287
    %v534 = vmul.f32 %v292, %v292
    %v535 = vmul.f32 %v297, %v297
    %v536 = vmul.f32 %v302, %v302
    %v537 = vmul.f32 %v307, %v307
    %v538 = vmul.f32 %v312, %v312
    %v539 = vmul.f32 %v317, %v317
    %v540 = vmul.f32 %v322, %v322
    %v541 = vmul.f32 %v327, %v327
    %v542 = vmul.f32 %v332, %v332
    %v543 = vmul.f32 %v337, %v337
    %v544 = vmul.f32 %v342, %v342
    %v545 = vmul.f32 %v347, %v347
    %v546 = vmul.f32 %v352, %v352
    %v547 = vmul.f32 %v357, %v357
    %v548 = vmul.f32 %v362, %v362
    %v549 = vmul.f32 %v367, %v367
    %v550 = vmul.f32 %v372, %v372
    %v551 = vmul.f32 %v377, %v377
    %v552 = vmul.f32 %v382, %v382
    %v553 = vmul.f32 %v387, %v387
    %v554 = vmul.f32 %v392, %v392
    %v555 = vmul.f32 %v397, %v397
    %v556 = vmul.f32 %v402, %v402
    %v557 = vmul.f32 %v407, %v407
    %v558 = vmul.f32 %v412, %v412
    %v559 = vmul.f32 %v417, %v417
    %v560 = vmul.f32 %v422, %v422
    %v561 = vmul.f32 %v427, %v427
    %v562 = vmul.f32 %v432, %v432
    %v563 = vmul.f32 %v437, %v437
    %v564 = vmul.f32 %v442, %v442
    %v565 = vmul.f32 %v447, %v447
    %v566 = vmul.f32 %v452, %v452
    %v567 = vmul.f32 %v457, %v457
    %v568 = vmul.f32 %v462, %v462
    %v569 = vmul.f32 %v467, %v467
    %v570 = vmul.f32 %v472, %v472
    %v571 = vmul.f32 %v477, %v477
    %v572 = vmul.f32 %v482, %v482
    %v573 = vmul.f32 %v487, %v487
    %v574 = vmul.f32 %v492, %v492
    %v575 = vmul.f32 %v497, %v497
    %v576 = vmul.f32 %v502, %v502
    %v577 = vmul.f32 %v507, %v507
    %v578 = vmul.f32 %v512, %v512
    %579 = vadd.xlane.f32.xlu0 %v515
    %v580 = vpop.xlane.xlu0 %579
    %581 = vadd.xlane.f32.xlu0 %v516
    %v582 = vpop.xlane.xlu0 %581
    %583 = vadd.xlane.f32.xlu0 %v517
    %v584 = vpop.xlane.xlu0 %583
    %585 = vadd.xlane.f32.xlu0 %v518
    %v586 = vpop.xlane.xlu0 %585
    %587 = vadd.xlane.f32.xlu0 %v519
    %v588 = vpop.xlane.xlu0 %587
    %589 = vadd.xlane.f32.xlu0 %v520
    %v590 = vpop.xlane.xlu0 %589
    %591 = vadd.xlane.f32.xlu0 %v521
    %v592 = vpop.xlane.xlu0 %591
    %593 = vadd.xlane.f32.xlu0 %v522
    %v594 = vpop.xlane.xlu0 %593
    %595 = vadd.xlane.f32.xlu0 %v523
    %v596 = vpop.xlane.xlu0 %595
    %597 = vadd.xlane.f32.xlu0 %v524
    %v598 = vpop.xlane.xlu0 %597
    %599 = vadd.xlane.f32.xlu0 %v525
    %v600 = vpop.xlane.xlu0 %599
    %601 = vadd.xlane.f32.xlu0 %v526
    %v602 = vpop.xlane.xlu0 %601
    %603 = vadd.xlane.f32.xlu0 %v527
    %v604 = vpop.xlane.xlu0 %603
    %605 = vadd.xlane.f32.xlu0 %v528
    %v606 = vpop.xlane.xlu0 %605
    %607 = vadd.xlane.f32.xlu0 %v529
    %v608 = vpop.xlane.xlu0 %607
    %609 = vadd.xlane.f32.xlu0 %v530
    %v610 = vpop.xlane.xlu0 %609
    %611 = vadd.xlane.f32.xlu0 %v531
    %v612 = vpop.xlane.xlu0 %611
    %613 = vadd.xlane.f32.xlu0 %v532
    %v614 = vpop.xlane.xlu0 %613
    %615 = vadd.xlane.f32.xlu0 %v533
    %v616 = vpop.xlane.xlu0 %615
    %617 = vadd.xlane.f32.xlu0 %v534
    %v618 = vpop.xlane.xlu0 %617
    %619 = vadd.xlane.f32.xlu0 %v535
    %v620 = vpop.xlane.xlu0 %619
    %621 = vadd.xlane.f32.xlu0 %v536
    %v622 = vpop.xlane.xlu0 %621
    %623 = vadd.xlane.f32.xlu0 %v537
    %v624 = vpop.xlane.xlu0 %623
    %625 = vadd.xlane.f32.xlu0 %v538
    %v626 = vpop.xlane.xlu0 %625
    %627 = vadd.xlane.f32.xlu0 %v539
    %v628 = vpop.xlane.xlu0 %627
    %629 = vadd.xlane.f32.xlu0 %v540
    %v630 = vpop.xlane.xlu0 %629
    %631 = vadd.xlane.f32.xlu0 %v541
    %v632 = vpop.xlane.xlu0 %631
    %633 = vadd.xlane.f32.xlu0 %v542
    %v634 = vpop.xlane.xlu0 %633
    %635 = vadd.xlane.f32.xlu0 %v543
    %v636 = vpop.xlane.xlu0 %635
    %637 = vadd.xlane.f32.xlu0 %v544
    %v638 = vpop.xlane.xlu0 %637
    %639 = vadd.xlane.f32.xlu0 %v545
    %v640 = vpop.xlane.xlu0 %639
    %641 = vadd.xlane.f32.xlu0 %v546
    %v642 = vpop.xlane.xlu0 %641
    %643 = vadd.xlane.f32.xlu0 %v547
    %v644 = vpop.xlane.xlu0 %643
    %645 = vadd.xlane.f32.xlu0 %v548
    %v646 = vpop.xlane.xlu0 %645
    %647 = vadd.xlane.f32.xlu0 %v549
    %v648 = vpop.xlane.xlu0 %647
    %649 = vadd.xlane.f32.xlu0 %v550
    %v650 = vpop.xlane.xlu0 %649
    %651 = vadd.xlane.f32.xlu0 %v551
    %v652 = vpop.xlane.xlu0 %651
    %653 = vadd.xlane.f32.xlu0 %v552
    %v654 = vpop.xlane.xlu0 %653
    %655 = vadd.xlane.f32.xlu0 %v553
    %v656 = vpop.xlane.xlu0 %655
    %657 = vadd.xlane.f32.xlu0 %v554
    %v658 = vpop.xlane.xlu0 %657
    %659 = vadd.xlane.f32.xlu0 %v555
    %v660 = vpop.xlane.xlu0 %659
    %661 = vadd.xlane.f32.xlu0 %v556
    %v662 = vpop.xlane.xlu0 %661
    %663 = vadd.xlane.f32.xlu0 %v557
    %v664 = vpop.xlane.xlu0 %663
    %665 = vadd.xlane.f32.xlu0 %v558
    %v666 = vpop.xlane.xlu0 %665
    %667 = vadd.xlane.f32.xlu0 %v559
    %v668 = vpop.xlane.xlu0 %667
    %669 = vadd.xlane.f32.xlu0 %v560
    %v670 = vpop.xlane.xlu0 %669
    %671 = vadd.xlane.f32.xlu0 %v561
    %v672 = vpop.xlane.xlu0 %671
    %673 = vadd.xlane.f32.xlu0 %v562
    %v674 = vpop.xlane.xlu0 %673
    %675 = vadd.xlane.f32.xlu0 %v563
    %v676 = vpop.xlane.xlu0 %675
    %677 = vadd.xlane.f32.xlu0 %v564
    %v678 = vpop.xlane.xlu0 %677
    %679 = vadd.xlane.f32.xlu0 %v565
    %v680 = vpop.xlane.xlu0 %679
    %681 = vadd.xlane.f32.xlu0 %v566
    %v682 = vpop.xlane.xlu0 %681
    %683 = vadd.xlane.f32.xlu0 %v567
    %v684 = vpop.xlane.xlu0 %683
    %685 = vadd.xlane.f32.xlu0 %v568
    %v686 = vpop.xlane.xlu0 %685
    %687 = vadd.xlane.f32.xlu0 %v569
    %v688 = vpop.xlane.xlu0 %687
    %689 = vadd.xlane.f32.xlu0 %v570
    %v690 = vpop.xlane.xlu0 %689
    %691 = vadd.xlane.f32.xlu0 %v571
    %v692 = vpop.xlane.xlu0 %691
    %693 = vadd.xlane.f32.xlu0 %v572
    %v694 = vpop.xlane.xlu0 %693
    %695 = vadd.xlane.f32.xlu0 %v573
    %v696 = vpop.xlane.xlu0 %695
    %697 = vadd.xlane.f32.xlu0 %v574
    %v698 = vpop.xlane.xlu0 %697
    %699 = vadd.xlane.f32.xlu0 %v575
    %v700 = vpop.xlane.xlu0 %699
    %701 = vadd.xlane.f32.xlu0 %v576
    %v702 = vpop.xlane.xlu0 %701
    %703 = vadd.xlane.f32.xlu0 %v577
    %v704 = vpop.xlane.xlu0 %703
    %705 = vadd.xlane.f32.xlu0 %v578
    %v706 = vpop.xlane.xlu0 %705
    %v707 = vrsqrt.pop %v580
    %v708 = vrsqrt.pop %v582
    %v709 = vrsqrt.pop %v584
    %v710 = vrsqrt.pop %v586
    %v711 = vrsqrt.pop %v588
    %v712 = vrsqrt.pop %v590
    %v713 = vrsqrt.pop %v592
    %v714 = vrsqrt.pop %v594
    %v715 = vrsqrt.pop %v596
    %v716 = vrsqrt.pop %v598
    %v717 = vrsqrt.pop %v600
    %v718 = vrsqrt.pop %v602
    %v719 = vrsqrt.pop %v604
    %v720 = vrsqrt.pop %v606
    %v721 = vrsqrt.pop %v608
    %v722 = vrsqrt.pop %v610
    %v723 = vrsqrt.pop %v612
    %v724 = vrsqrt.pop %v614
    %v725 = vrsqrt.pop %v616
    %v726 = vrsqrt.pop %v618
    %v727 = vrsqrt.pop %v620
    %v728 = vrsqrt.pop %v622
    %v729 = vrsqrt.pop %v624
    %v730 = vrsqrt.pop %v626
    %v731 = vrsqrt.pop %v628
    %v732 = vrsqrt.pop %v630
    %v733 = vrsqrt.pop %v632
    %v734 = vrsqrt.pop %v634
    %v735 = vrsqrt.pop %v636
    %v736 = vrsqrt.pop %v638
    %v737 = vrsqrt.pop %v640
    %v738 = vrsqrt.pop %v642
    %v739 = vrsqrt.pop %v644
    %v740 = vrsqrt.pop %v646
    %v741 = vrsqrt.pop %v648
    %v742 = vrsqrt.pop %v650
    %v743 = vrsqrt.pop %v652
    %v744 = vrsqrt.pop %v654
    %v745 = vrsqrt.pop %v656
    %v746 = vrsqrt.pop %v658
    %v747 = vrsqrt.pop %v660
    %v748 = vrsqrt.pop %v662
    %v749 = vrsqrt.pop %v664
    %v750 = vrsqrt.pop %v666
    %v751 = vrsqrt.pop %v668
    %v752 = vrsqrt.pop %v670
    %v753 = vrsqrt.pop %v672
    %v754 = vrsqrt.pop %v674
    %v755 = vrsqrt.pop %v676
    %v756 = vrsqrt.pop %v678
    %v757 = vrsqrt.pop %v680
    %v758 = vrsqrt.pop %v682
    %v759 = vrsqrt.pop %v684
    %v760 = vrsqrt.pop %v686
    %v761 = vrsqrt.pop %v688
    %v762 = vrsqrt.pop %v690
    %v763 = vrsqrt.pop %v692
    %v764 = vrsqrt.pop %v694
    %v765 = vrsqrt.pop %v696
    %v766 = vrsqrt.pop %v698
    %v767 = vrsqrt.pop %v700
    %v768 = vrsqrt.pop %v702
    %v769 = vrsqrt.pop %v704
    %v770 = vrsqrt.pop %v706
    %v771 = vmul.f32 %v707, 0.5
    %v772 = vmul.f32 %v708, 0.5
    %v773 = vmul.f32 %v709, 0.5
    %v774 = vmul.f32 %v710, 0.5
    %v775 = vmul.f32 %v711, 0.5
    %v776 = vmul.f32 %v712, 0.5
    %v777 = vmul.f32 %v713, 0.5
    %v778 = vmul.f32 %v714, 0.5
    %v779 = vmul.f32 %v715, 0.5
    %v780 = vmul.f32 %v716, 0.5
    %v781 = vmul.f32 %v717, 0.5
    %v782 = vmul.f32 %v718, 0.5
    %v783 = vmul.f32 %v719, 0.5
    %v784 = vmul.f32 %v720, 0.5
    %v785 = vmul.f32 %v721, 0.5
    %v786 = vmul.f32 %v722, 0.5
    %v787 = vmul.f32 %v723, 0.5
    %v788 = vmul.f32 %v724, 0.5
    %v789 = vmul.f32 %v725, 0.5
    %v790 = vmul.f32 %v726, 0.5
    %v791 = vmul.f32 %v727, 0.5
    %v792 = vmul.f32 %v728, 0.5
    %v793 = vmul.f32 %v729, 0.5
    %v794 = vmul.f32 %v730, 0.5
    %v795 = vmul.f32 %v731, 0.5
    %v796 = vmul.f32 %v732, 0.5
    %v797 = vmul.f32 %v733, 0.5
    %v798 = vmul.f32 %v734, 0.5
    %v799 = vmul.f32 %v735, 0.5
    %v800 = vmul.f32 %v736, 0.5
    %v801 = vmul.f32 %v737, 0.5
    %v802 = vmul.f32 %v738, 0.5
    %v803 = vmul.f32 %v739, 0.5
    %v804 = vmul.f32 %v740, 0.5
    %v805 = vmul.f32 %v741, 0.5
    %v806 = vmul.f32 %v742, 0.5
    %v807 = vmul.f32 %v743, 0.5
    %v808 = vmul.f32 %v744, 0.5
    %v809 = vmul.f32 %v745, 0.5
    %v810 = vmul.f32 %v746, 0.5
    %v811 = vmul.f32 %v747, 0.5
    %v812 = vmul.f32 %v748, 0.5
    %v813 = vmul.f32 %v749, 0.5
    %v814 = vmul.f32 %v750, 0.5
    %v815 = vmul.f32 %v751, 0.5
    %v816 = vmul.f32 %v752, 0.5
    %v817 = vmul.f32 %v753, 0.5
    %v818 = vmul.f32 %v754, 0.5
    %v819 = vmul.f32 %v755, 0.5
    %v820 = vmul.f32 %v756, 0.5
    %v821 = vmul.f32 %v757, 0.5
    %v822 = vmul.f32 %v758, 0.5
    %v823 = vmul.f32 %v759, 0.5
    %v824 = vmul.f32 %v760, 0.5
    %v825 = vmul.f32 %v761, 0.5
    %v826 = vmul.f32 %v762, 0.5
    %v827 = vmul.f32 %v763, 0.5
    %v828 = vmul.f32 %v764, 0.5
    %v829 = vmul.f32 %v765, 0.5
    %v830 = vmul.f32 %v766, 0.5
    %v831 = vmul.f32 %v767, 0.5
    %v832 = vmul.f32 %v768, 0.5
    %v833 = vmul.f32 %v769, 0.5
    %v834 = vmul.f32 %v770, 0.5
    %v835 = vmul.f32 %v197, %v771
    %v836 = vmul.f32 %v202, %v772
    %v837 = vmul.f32 %v207, %v773
    %v838 = vmul.f32 %v212, %v774
    %v839 = vmul.f32 %v217, %v775
    %v840 = vmul.f32 %v222, %v776
    %v841 = vmul.f32 %v227, %v777
    %v842 = vmul.f32 %v232, %v778
    %v843 = vmul.f32 %v237, %v779
    %v844 = vmul.f32 %v242, %v780
    %v845 = vmul.f32 %v247, %v781
    %v846 = vmul.f32 %v252, %v782
    %v847 = vmul.f32 %v257, %v783
    %v848 = vmul.f32 %v262, %v784
    %v849 = vmul.f32 %v267, %v785
    %v850 = vmul.f32 %v272, %v786
    %v851 = vmul.f32 %v277, %v787
    %v852 = vmul.f32 %v282, %v788
    %v853 = vmul.f32 %v287, %v789
    %v854 = vmul.f32 %v292, %v790
    %v855 = vmul.f32 %v297, %v791
    %v856 = vmul.f32 %v302, %v792
    %v857 = vmul.f32 %v307, %v793
    %v858 = vmul.f32 %v312, %v794
    %v859 = vmul.f32 %v317, %v795
    %v860 = vmul.f32 %v322, %v796
    %v861 = vmul.f32 %v327, %v797
    %v862 = vmul.f32 %v332, %v798
    %v863 = vmul.f32 %v337, %v799
    %v864 = vmul.f32 %v342, %v800
    %v865 = vmul.f32 %v347, %v801
    %v866 = vmul.f32 %v352, %v802
    %v867 = vmul.f32 %v357, %v803
    %v868 = vmul.f32 %v362, %v804
    %v869 = vmul.f32 %v367, %v805
    %v870 = vmul.f32 %v372, %v806
    %v871 = vmul.f32 %v377, %v807
    %v872 = vmul.f32 %v382, %v808
    %v873 = vmul.f32 %v387, %v809
    %v874 = vmul.f32 %v392, %v810
    %v875 = vmul.f32 %v397, %v811
    %v876 = vmul.f32 %v402, %v812
    %v877 = vmul.f32 %v407, %v813
    %v878 = vmul.f32 %v412, %v814
    %v879 = vmul.f32 %v417, %v815
    %v880 = vmul.f32 %v422, %v816
    %v881 = vmul.f32 %v427, %v817
    %v882 = vmul.f32 %v432, %v818
    %v883 = vmul.f32 %v437, %v819
    %v884 = vmul.f32 %v442, %v820
    %v885 = vmul.f32 %v447, %v821
    %v886 = vmul.f32 %v452, %v822
    %v887 = vmul.f32 %v457, %v823
    %v888 = vmul.f32 %v462, %v824
    %v889 = vmul.f32 %v467, %v825
    %v890 = vmul.f32 %v472, %v826
    %v891 = vmul.f32 %v477, %v827
    %v892 = vmul.f32 %v482, %v828
    %v893 = vmul.f32 %v487, %v829
    %v894 = vmul.f32 %v492, %v830
    %v895 = vmul.f32 %v497, %v831
    %v896 = vmul.f32 %v502, %v832
    %v897 = vmul.f32 %v507, %v833
    %v898 = vmul.f32 %v512, %v834
    %899 = vst [vmem:[#allocation7] sm:$0xff] %v835
    %900 = vst [vmem:[#allocation7 + $0x8] sm:$0xff] %v836
    %901 = vst [vmem:[#allocation7 + $0x10] sm:$0xff] %v837
    %902 = vst [vmem:[#allocation7 + $0x18] sm:$0xff] %v838
    %903 = vst [vmem:[#allocation7 + $0x20] sm:$0xff] %v839
    %904 = vst [vmem:[#allocation7 + $0x28] sm:$0xff] %v840
    %905 = vst [vmem:[#allocation7 + $0x30] sm:$0xff] %v841
    %906 = vst [vmem:[#allocation7 + $0x38] sm:$0xff] %v842
    %907 = vst [vmem:[#allocation7 + $0x40] sm:$0xff] %v843
    %908 = vst [vmem:[#allocation7 + $0x48] sm:$0xff] %v844
    %909 = vst [vmem:[#allocation7 + $0x50] sm:$0xff] %v845
    %910 = vst [vmem:[#allocation7 + $0x58] sm:$0xff] %v846
    %911 = vst [vmem:[#allocation7 + $0x60] sm:$0xff] %v847
    %912 = vst [vmem:[#allocation7 + $0x68] sm:$0xff] %v848
    %913 = vst [vmem:[#allocation7 + $0x70] sm:$0xff] %v849
    %914 = vst [vmem:[#allocation7 + $0x78] sm:$0xff] %v850
    %915 = vst [vmem:[#allocation7 + $0x80] sm:$0xff] %v851
    %916 = vst [vmem:[#allocation7 + $0x88] sm:$0xff] %v852
    %917 = vst [vmem:[#allocation7 + $0x90] sm:$0xff] %v853
    %918 = vst [vmem:[#allocation7 + $0x98] sm:$0xff] %v854
    %919 = vst [vmem:[#allocation7 + $0xa0] sm:$0xff] %v855
    %920 = vst [vmem:[#allocation7 + $0xa8] sm:$0xff] %v856
    %921 = vst [vmem:[#allocation7 + $0xb0] sm:$0xff] %v857
    %922 = vst [vmem:[#allocation7 + $0xb8] sm:$0xff] %v858
    %923 = vst [vmem:[#allocation7 + $0xc0] sm:$0xff] %v859
    %924 = vst [vmem:[#allocation7 + $0xc8] sm:$0xff] %v860
    %925 = vst [vmem:[#allocation7 + $0xd0] sm:$0xff] %v861
    %926 = vst [vmem:[#allocation7 + $0xd8] sm:$0xff] %v862
    %927 = vst [vmem:[#allocation7 + $0xe0] sm:$0xff] %v863
    %928 = vst [vmem:[#allocation7 + $0xe8] sm:$0xff] %v864
    %929 = vst [vmem:[#allocation7 + $0xf0] sm:$0xff] %v865
    %930 = vst [vmem:[#allocation7 + $0xf8] sm:$0xff] %v866
    %931 = vst [vmem:[#allocation7 + $0x100] sm:$0xff] %v867
    %932 = vst [vmem:[#allocation7 + $0x108] sm:$0xff] %v868
    %933 = vst [vmem:[#allocation7 + $0x110] sm:$0xff] %v869
    %934 = vst [vmem:[#allocation7 + $0x118] sm:$0xff] %v870
    %935 = vst [vmem:[#allocation7 + $0x120] sm:$0xff] %v871
    %936 = vst [vmem:[#allocation7 + $0x128] sm:$0xff] %v872
    %937 = vst [vmem:[#allocation7 + $0x130] sm:$0xff] %v873
    %938 = vst [vmem:[#allocation7 + $0x138] sm:$0xff] %v874
    %939 = vst [vmem:[#allocation7 + $0x140] sm:$0xff] %v875
    %940 = vst [vmem:[#allocation7 + $0x148] sm:$0xff] %v876
    %941 = vst [vmem:[#allocation7 + $0x150] sm:$0xff] %v877
    %942 = vst [vmem:[#allocation7 + $0x158] sm:$0xff] %v878
    %943 = vst [vmem:[#allocation7 + $0x160] sm:$0xff] %v879
    %944 = vst [vmem:[#allocation7 + $0x168] sm:$0xff] %v880
    %945 = vst [vmem:[#allocation7 + $0x170] sm:$0xff] %v881
    %946 = vst [vmem:[#allocation7 + $0x178] sm:$0xff] %v882
    %947 = vst [vmem:[#allocation7 + $0x180] sm:$0xff] %v883
    %948 = vst [vmem:[#allocation7 + $0x188] sm:$0xff] %v884
    %949 = vst [vmem:[#allocation7 + $0x190] sm:$0xff] %v885
    %950 = vst [vmem:[#allocation7 + $0x198] sm:$0xff] %v886
    %951 = vst [vmem:[#allocation7 + $0x1a0] sm:$0xff] %v887
    %952 = vst [vmem:[#allocation7 + $0x1a8] sm:$0xff] %v888
    %953 = vst [vmem:[#allocation7 + $0x1b0] sm:$0xff] %v889
    %954 = vst [vmem:[#allocation7 + $0x1b8] sm:$0xff] %v890
    %955 = vst [vmem:[#allocation7 + $0x1c0] sm:$0xff] %v891
    %956 = vst [vmem:[#allocation7 + $0x1c8] sm:$0xff] %v892
    %957 = vst [vmem:[#allocation7 + $0x1d0] sm:$0xff] %v893
    %958 = vst [vmem:[#allocation7 + $0x1d8] sm:$0xff] %v894
    %959 = vst [vmem:[#allocation7 + $0x1e0] sm:$0xff] %v895
    %960 = vst [vmem:[#allocation7 + $0x1e8] sm:$0xff] %v896
    %961 = vst [vmem:[#allocation7 + $0x1f0] sm:$0xff] %v897
    %962 = vst [vmem:[#allocation7 + $0x1f8] sm:$0xff] %v898
    // Predicated region
    $region22: #{tpu_custom_call.1} parent=1 // pred_check
      _
    $region23: #{tpu_custom_call.1} parent=1 // pred_check_branch
      %964 = sbr.rel (0) target = $region25
    $region24: #{tpu_custom_call.1} parent=1 // pred_region
      %s966 = ssub.s32 8192, 8192
      %967 = vsyncadd [#allocation4], %s966
      %s968 = sshll.u32 [#allocation7], 4
      %s969 = int_to_ptr.vmem [resolvable:$true] %s968
      %974 = dma.vmem_to_hbm [thread:$0]  %s969, 8192, %s3, [#allocation4], 128, 128, 8
    $region25: #{tpu_custom_call.1} parent=1 // pred_fallthru
      _
    // Predicated region
    $region26: #{tpu_custom_call.1} parent=1 // pred_check
      _
    $region27: #{tpu_custom_call.1} parent=1 // pred_check_branch
      %976 = sbr.rel (0) target = $region29
    $region28: #{tpu_custom_call.1} parent=1 // pred_region
      %977 = dma.done [#allocation4], 8192
    $region29: #{tpu_custom_call.1} parent=1 // pred_fallthru
      _
    %978 = vsyncpa [#allocation3], 1
    %979 = vsyncpa [#allocation6], 1
    %980 = vsyncpa [#allocation4], 1

</llo_original>
